<compile_context>
chip_gen: v5e
topology: v5e:2x2
jax: 0.10.0
libtpu: 0.0.40
codegen_flags: <defaults>
</compile_context>

<pallas_src>
import jax
import jax.numpy as jnp
from jax.experimental import pallas as pl
from jax.experimental.pallas import tpu as pltpu

LANES = 512            # lane-dense (multiple of 128) -> unmasked vst
MAX_BLOCK_ROWS = 1024  # 1024 x 512 x 4B = 2 MiB per f32 block


def _swish_kernel(w_ref, x_ref, o_ref):
    # w_ref: SMEM (1,) f32 scalar parameter; x_ref/o_ref: VMEM (block_rows, LANES)
    w = w_ref[0]
    x = x_ref[...].astype(jnp.float32)
    o_ref[...] = (x * jax.nn.sigmoid(w * x)).astype(o_ref.dtype)


def swish(x: jax.Array, weight: jax.Array) -> jax.Array:
    """Elementwise Swish with a learnable scalar weight (num_parameters=1).

    Matches PyTorch: input_ * torch.sigmoid(weight * input_).
    """
    if weight.size != 1:
        # TODO(synk): per-parameter (num_parameters > 1) broadcast path not implemented.
        raise NotImplementedError("only num_parameters=1 is supported")

    orig_shape = x.shape
    orig_dtype = x.dtype
    n = x.size

    flat = x.reshape(-1)
    padded = pl.cdiv(n, LANES) * LANES
    needs_pad = padded != n
    if needs_pad:
        # Only the ragged tail (< LANES elements) is padded; swish(0) == 0.
        flat = jnp.pad(flat, (0, padded - n))
    rows = padded // LANES
    x2d = flat.reshape(rows, LANES)

    # Biggest block that fits the policy: full array if small, else 2 MiB tiles.
    block_rows = rows if rows <= MAX_BLOCK_ROWS else MAX_BLOCK_ROWS
    grid = (pl.cdiv(rows, block_rows),)

    out2d = pl.pallas_call(
        _swish_kernel,
        out_shape=jax.ShapeDtypeStruct((rows, LANES), orig_dtype),
        grid_spec=pltpu.PrefetchScalarGridSpec(
            num_scalar_prefetch=0,
            grid=grid,
            in_specs=[
                pl.BlockSpec(memory_space=pltpu.MemorySpace.SMEM),    # weight (1,)
                pl.BlockSpec((block_rows, LANES), lambda i: (i, 0)),  # x tile
            ],
            out_specs=pl.BlockSpec((block_rows, LANES), lambda i: (i, 0)),
        ),
        compiler_params=pltpu.CompilerParams(
            dimension_semantics=("parallel",),
            vmem_limit_bytes=32 * 1024 * 1024,
        ),
    )(weight.reshape(-1).astype(jnp.float32), x2d)

    if needs_pad:
        return out2d.reshape(-1)[:n].reshape(orig_shape)
    return out2d.reshape(orig_shape)


if __name__ == "__main__":
    key = jax.random.PRNGKey(0)
    # Small NCHW input consistent with typical usage of this activation.
    x = jax.random.normal(key, (2, 4, 16, 16), dtype=jnp.float32)

    # Module __init__: num_parameters=1, init=1 -> weight = [1.0]
    num_parameters = 1
    init = 1.0
    weight = jnp.full((num_parameters,), init, dtype=jnp.float32)

    out = swish(x, weight)
    out = jax.block_until_ready(out)

    # Reference check against plain JAX
    ref = x * jax.nn.sigmoid(weight[0] * x)
    assert out.shape == x.shape and out.dtype == x.dtype
    assert jnp.allclose(out, ref, atol=1e-6, rtol=1e-6)

    print("KERNEL_OK")
</pallas_src>

<mosaic_0001>
module attributes {stable_mosaic.version = 11 : i64} {
  func.func @_swish_kernel(%arg0: i32, %arg1: memref<1xf32, #tpu.memory_space<smem>>, %arg2: memref<4x512xf32, #tpu.memory_space<vmem>>, %arg3: memref<4x512xf32, #tpu.memory_space<vmem>>) attributes {dimension_semantics = [#tpu.dimension_semantics<parallel>], iteration_bounds = array<i64: 1>, scalar_prefetch = 0 : i64, scratch_operands = 0 : i64, tpu.core_type = #tpu.core_type<tc>, window_params = [{transform_indices = @transform_0, window_bounds = array<i64: 1>}, {transform_indices = @transform_1, window_bounds = array<i64: 4, 512>}, {transform_indices = @transform_2, window_bounds = array<i64: 4, 512>}]} {
    %c0 = arith.constant 0 : index
    %0 = memref.load %arg1[%c0] : memref<1xf32, #tpu.memory_space<smem>>
    %c0_0 = arith.constant 0 : index
    %c0_1 = arith.constant 0 : index
    %1 = vector.load %arg2[%c0_0, %c0_1] : memref<4x512xf32, #tpu.memory_space<vmem>>, vector<4x512xf32>
    %2 = vector.broadcast %0 : f32 to vector<4x512xf32>
    %3 = arith.mulf %2, %1 : vector<4x512xf32>
    %4 = arith.negf %3 : vector<4x512xf32>
    %5 = math.exp %4 : vector<4x512xf32>
    %cst = arith.constant 1.000000e+00 : f32
    %6 = vector.broadcast %cst : f32 to vector<4x512xf32>
    %7 = arith.addf %6, %5 : vector<4x512xf32>
    %8 = arith.divf %6, %7 : vector<4x512xf32>
    %9 = arith.mulf %1, %8 : vector<4x512xf32>
    %c0_2 = arith.constant 0 : index
    %c0_3 = arith.constant 0 : index
    %10 = vector.load %arg3[%c0_2, %c0_3] : memref<4x512xf32, #tpu.memory_space<vmem>>, vector<4x512xf32>
    tpu.vector_store %arg3[%c0_2, %c0_3], %9 {strides = array<i32>} : memref<4x512xf32, #tpu.memory_space<vmem>>, vector<4x512xf32>,
    return
  }
  func.func @transform_0(%arg0: i32) -> i32 {
    %c0_i32 = arith.constant 0 : i32
    %c0_i32_0 = arith.constant 0 : i32
    return %c0_i32 : i32
  }
  func.func @transform_1(%arg0: i32) -> (i32, i32) {
    %c0_i32 = arith.constant 0 : i32
    %c0_i32_0 = arith.constant 0 : i32
    return %arg0, %c0_i32 : i32, i32
  }
  func.func @transform_2(%arg0: i32) -> (i32, i32) {
    %c0_i32 = arith.constant 0 : i32
    %c0_i32_0 = arith.constant 0 : i32
    return %arg0, %c0_i32 : i32, i32
  }
}

</mosaic_0001>

<llo_original>
// kernel: tpu_custom_call.1
$region0: #{tpu_custom_call.1}
  #allocation0 [shape = 'u32[]', space=smem, size = 0x4, offset = 0x4, fixed_abs, tag = 'smem constant byte address 0x4 - core index']
  #allocation1 [shape = 'u32[72,128]{1,0:T(1,128)}', space=vmem, size = 0x9000, scoped, tag = 'internal scratch']
  #allocation2 [shape = 'f32[1]{0:T(128)S(6)}', space=smem, size = 0x200, scoped, tag = 'scoped memory for tpu_custom_call.1']
  %s0 = inlined_call_operand.<no memory space> [shape: f32[1], index: 0, kind: input, shape index: {}]
  %s1 = inlined_call_operand.hbm [shape: f32[4,512], index: 1, kind: input, shape index: {}]
  %s2 = inlined_call_operand.hbm [shape: f32[4,512], index: 2, kind: output, shape index: {}]
  %s3 = sld [smem:[#allocation0]]
  $region22: #{tpu_custom_call.1} parent=0
    _
  %s5 = ssub.s32 1, %s3
  %s6 = scalar_select 0, %s5, %s3
  %7 = sst [smem:[#allocation2]] %s0
  $region1: #{tpu_custom_call.1} parent=0
    #allocation3 [shape = 'u8[8192]{0}', space=vmem, size = 0x2000, scoped, tag = 'input window, operand 1, single buffered']
    #allocation4 [shape = 's32[1]{0}', space=sflag, size = 0x4, scoped, tag = 'scoped memory for tpu_custom_call.1']
    #allocation5 [shape = 's32[1]{0}', space=sflag, size = 0x4, scoped, tag = 'scoped memory for tpu_custom_call.1']
    #allocation6 [shape = 'u8[8192]{0}', space=vmem, size = 0x2000, scoped, tag = 'output window, operand 0, single buffered']
    %8 = vsyncpa [#allocation4], 0
    %9 = vsyncpa [#allocation5], 0
    // Predicated region
    $region2: #{tpu_custom_call.1} parent=1 // pred_check
      _
    $region3: #{tpu_custom_call.1} parent=1 // pred_check_branch
      %11 = sbr.rel (0) target = $region5
    $region4: #{tpu_custom_call.1} parent=1 // pred_region
      _
    $region5: #{tpu_custom_call.1} parent=1 // pred_fallthru
      _
    // Predicated region
    $region6: #{tpu_custom_call.1} parent=1 // pred_check
      _
    $region7: #{tpu_custom_call.1} parent=1 // pred_check_branch
      %13 = sbr.rel (0) target = $region9
    $region8: #{tpu_custom_call.1} parent=1 // pred_region
      %15 = vsyncadd [#allocation4], 0
      %s17 = sshll.u32 %s1, 4
      %s18 = int_to_ptr.hbm [resolvable:$true] %s17
      %s19 = sshll.u32 [#allocation3], 4
      %s20 = int_to_ptr.vmem [resolvable:$true] %s19
      %22 = dma.hbm_to_vmem [thread:$0]  %s18, 256, %s20, [#allocation4]
    $region9: #{tpu_custom_call.1} parent=1 // pred_fallthru
      _
    // Predicated region
    $region10: #{tpu_custom_call.1} parent=1 // pred_check
      _
    $region11: #{tpu_custom_call.1} parent=1 // pred_check_branch
      %24 = sbr.rel (0) target = $region13
    $region12: #{tpu_custom_call.1} parent=1 // pred_region
      %26 = dma.done [#allocation4], 256
    $region13: #{tpu_custom_call.1} parent=1 // pred_fallthru
      _
    %s27 = sld [smem:[#allocation2]]
    %v28 = vld [vmem:[#allocation3] sm:$0xff]
    %v29 = vld [vmem:[#allocation3 + $0x8] sm:$0xff]
    %v30 = vstv %s27
    %v31 = vmul.f32 %v30, %v28
    %v32 = vmul.f32 %v30, %v29
    %v33 = vxor.u32 %v31, 2147483648
    %v34 = vxor.u32 %v32, 2147483648
    %v35 = vmul.f32 %v33, 1.442695
    %v36 = vpow.pop %v35
    %v37 = vmul.f32 %v34, 1.442695
    %v38 = vpow.pop %v37
    %v39 = vadd.f32 %v36, 1.0
    %v40 = vadd.f32 %v38, 1.0
    %v41 = vrcp.pop %v39
    %v42 = vmul.f32 %v39, %v41
    %v43 = vsub.f32 1.0, %v42
    %v44 = vmul.f32 %v41, %v43
    %v45 = vadd.f32 %v41, %v44
    %vm46 = vweird.f32 %v39
    %vm47 = vweird.f32 %v41
    %vm48 = vmor %vm46, %vm47
    %v49 = vsel %vm48, %v41, %v45
    %v50 = vand.u32 2147483647, %v39
    %vm51 = vcmp.eq.f32.partialorder %v50, 8.507059e+37
    %v52 = vand.u32 %v39, 2147483648
    %v53 = vor.u32 1.1754944e-38, %v52
    %v54 = vsel %vm51, %v53, %v49
    %v55 = vmul.f32 1.0, %v54
    %v56 = vrcp.pop %v40
    %v57 = vmul.f32 %v40, %v56
    %v58 = vsub.f32 1.0, %v57
    %v59 = vmul.f32 %v56, %v58
    %v60 = vadd.f32 %v56, %v59
    %vm61 = vweird.f32 %v40
    %vm62 = vweird.f32 %v56
    %vm63 = vmor %vm61, %vm62
    %v64 = vsel %vm63, %v56, %v60
    %v65 = vand.u32 2147483647, %v40
    %vm66 = vcmp.eq.f32.partialorder %v65, 8.507059e+37
    %v67 = vand.u32 %v40, 2147483648
    %v68 = vor.u32 1.1754944e-38, %v67
    %v69 = vsel %vm66, %v68, %v64
    %v70 = vmul.f32 1.0, %v69
    %v71 = vmul.f32 %v28, %v55
    %v72 = vmul.f32 %v29, %v70
    %73 = vst [vmem:[#allocation6] sm:$0xff] %v71
    %74 = vst [vmem:[#allocation6 + $0x8] sm:$0xff] %v72
    // Predicated region
    $region14: #{tpu_custom_call.1} parent=1 // pred_check
      _
    $region15: #{tpu_custom_call.1} parent=1 // pred_check_branch
      %76 = sbr.rel (0) target = $region17
    $region16: #{tpu_custom_call.1} parent=1 // pred_region
      %78 = vsyncadd [#allocation5], 0
      %s80 = sshll.u32 [#allocation6], 4
      %s81 = int_to_ptr.vmem [resolvable:$true] %s80
      %s82 = sshll.u32 %s2, 4
      %s83 = int_to_ptr.hbm [resolvable:$true] %s82
      %85 = dma.vmem_to_hbm [thread:$0]  %s81, 256, %s83, [#allocation5]
    $region17: #{tpu_custom_call.1} parent=1 // pred_fallthru
      _
    // Predicated region
    $region18: #{tpu_custom_call.1} parent=1 // pred_check
      _
    $region19: #{tpu_custom_call.1} parent=1 // pred_check_branch
      %87 = sbr.rel (0) target = $region21
    $region20: #{tpu_custom_call.1} parent=1 // pred_region
      %89 = dma.done [#allocation5], 256
    $region21: #{tpu_custom_call.1} parent=1 // pred_fallthru
      _
    %90 = vsyncpa [#allocation4], 1
    %91 = vsyncpa [#allocation5], 1

</llo_original>
